<compile_context>
chip_gen: v5e
topology: v5e:2x2
jax: 0.10.0
libtpu: 0.0.40
codegen_flags: <defaults>
</compile_context>

<pallas_src>
import functools

import jax
import jax.numpy as jnp
from jax import lax
from jax.experimental import pallas as pl
from jax.experimental.pallas import tpu as pltpu

EPS = 1e-5
MXU_DTYPE = jnp.bfloat16           # MXU operand dtype; accumulation / BN math stays f32
VMEM_LIMIT = 32 * 1024 * 1024      # explicit scoped-VMEM budget (safe on v5e/v6e/v7x)


def _pick_tile(n, cap):
    """Largest 'nice' tile (multiple of 8, <= cap) dividing n, else the full extent."""
    for t in (512, 256, 128, 64, 32, 16, 8):
        if t <= cap and n % t == 0:
            return t
    return n


def _pick_ktile(k):
    if k % 128 == 0 and k > 512:
        for t in (512, 384, 256, 128):
            if k % t == 0:
                return t
    return k


# ---------------------------------------------------------------------------
# Kernel 1: tiled matmul (1x1 conv) + per-tile BN statistics
#           optionally fuses a per-sample SE channel scale on the input.
# ---------------------------------------------------------------------------

def _mm_stats_kernel(*refs, n_k, has_scale):
    if has_scale:
        x_ref, w_ref, s_ref, y_ref, st_ref, acc_ref = refs
    else:
        x_ref, w_ref, y_ref, st_ref, acc_ref = refs
    k = pl.program_id(1)

    @pl.when(k == 0)
    def _():
        acc_ref[...] = jnp.zeros_like(acc_ref)

    x = x_ref[...]
    if has_scale:
        x = x * s_ref[0]                                   # (tm, tk) * (1, tk)
    acc_ref[...] += jnp.dot(x.astype(MXU_DTYPE), w_ref[...].astype(MXU_DTYPE),
                            preferred_element_type=jnp.float32)

    @pl.when(k == n_k - 1)
    def _():
        y = acc_ref[...]
        y_ref[...] = y
        s1 = jnp.sum(y, axis=0, keepdims=True)             # (1, Cout)
        s2 = jnp.sum(y * y, axis=0, keepdims=True)
        st_ref[...] = jnp.concatenate([s1, s2], axis=0)[None]   # (1, 2, Cout)


def matmul_bn_stats(x2d, w, se_scale=None, hw_per_sample=None, tm_cap=256):
    """y = (x * optional per-sample SE scale) @ w, plus per-tile column sum / sumsq."""
    M, K = x2d.shape
    Cout = w.shape[1]
    has_scale = se_scale is not None
    tm = _pick_tile(hw_per_sample if has_scale else M, tm_cap)
    tk = _pick_ktile(K)
    n_m, n_k = M // tm, K // tk

    in_specs = [
        pl.BlockSpec((tm, tk), lambda i, k: (i, k)),
        pl.BlockSpec((tk, Cout), lambda i, k: (k, 0)),
    ]
    args = [x2d, w]
    if has_scale:
        rows_per_sample = hw_per_sample // tm
        in_specs.append(
            pl.BlockSpec((1, 1, tk), lambda i, k: (i // rows_per_sample, 0, k)))
        args.append(se_scale.reshape(-1, 1, K))

    y, st = pl.pallas_call(
        functools.partial(_mm_stats_kernel, n_k=n_k, has_scale=has_scale),
        grid=(n_m, n_k),
        in_specs=in_specs,
        out_specs=[
            pl.BlockSpec((tm, Cout), lambda i, k: (i, 0)),
            pl.BlockSpec((1, 2, Cout), lambda i, k: (i, 0, 0)),
        ],
        out_shape=[
            jax.ShapeDtypeStruct((M, Cout), jnp.float32),
            jax.ShapeDtypeStruct((n_m, 2, Cout), jnp.float32),
        ],
        scratch_shapes=[pltpu.VMEM((tm, Cout), jnp.float32)],
        compiler_params=pltpu.CompilerParams(
            dimension_semantics=("parallel", "arbitrary"),
            vmem_limit_bytes=VMEM_LIMIT),
        cost_estimate=pl.CostEstimate(
            flops=2 * M * K * Cout, transcendentals=0,
            bytes_accessed=4 * (M * K + K * Cout + M * Cout)),
    )(*args)
    return y, st


# ---------------------------------------------------------------------------
# Kernel 2: fused BN apply (single FMA) + optional residual (+ shortcut BN) + ReLU
# ---------------------------------------------------------------------------

def _bn_apply_kernel(*refs, has_residual, residual_bn):
    if has_residual and residual_bn:
        y_ref, s_ref, b_ref, r_ref, rs_ref, rb_ref, o_ref = refs
    elif has_residual:
        y_ref, s_ref, b_ref, r_ref, o_ref = refs
    else:
        y_ref, s_ref, b_ref, o_ref = refs
    out = y_ref[...] * s_ref[...] + b_ref[...]
    if has_residual:
        r = r_ref[...]
        if residual_bn:
            r = r * rs_ref[...] + rb_ref[...]
        out = out + r
    o_ref[...] = jnp.maximum(out, 0.0)


def bn_apply(y, scale, shift, residual=None, res_scale=None, res_shift=None):
    M, C = y.shape
    tm = _pick_tile(M, 512)
    n_m = M // tm
    has_res = residual is not None
    res_bn = res_scale is not None

    vec_spec = pl.BlockSpec((1, C), lambda i: (0, 0))
    in_specs = [pl.BlockSpec((tm, C), lambda i: (i, 0)), vec_spec, vec_spec]
    args = [y, scale.reshape(1, C), shift.reshape(1, C)]
    if has_res:
        in_specs.append(pl.BlockSpec((tm, C), lambda i: (i, 0)))
        args.append(residual)
        if res_bn:
            in_specs += [vec_spec, vec_spec]
            args += [res_scale.reshape(1, C), res_shift.reshape(1, C)]

    return pl.pallas_call(
        functools.partial(_bn_apply_kernel, has_residual=has_res, residual_bn=res_bn),
        grid=(n_m,),
        in_specs=in_specs,
        out_specs=pl.BlockSpec((tm, C), lambda i: (i, 0)),
        out_shape=jax.ShapeDtypeStruct((M, C), jnp.float32),
        compiler_params=pltpu.CompilerParams(
            dimension_semantics=("parallel",), vmem_limit_bytes=VMEM_LIMIT),
    )(*args)


# ---------------------------------------------------------------------------
# Kernel 3: 3x3 conv (dense / block-diagonal-grouped), padding=1, stride 1 or 2.
#           In-kernel tap gather (no im2col), lane-dense NHWC output, per-sample stats.
# ---------------------------------------------------------------------------

def _conv3x3_stats_kernel(x_ref, w_ref, y_ref, st_ref, *, stride, Ho, Wo):
    h = pl.program_id(1)
    Cout = w_ref.shape[2]
    acc = jnp.zeros((Wo, Cout), jnp.float32)
    for kh in range(3):
        for kw in range(3):
            if stride == 1:
                tap = x_ref[0, pl.ds(h + kh, 1), pl.ds(kw, Wo), :][0]       # (Wo, Cin)
            else:
                p = (kh % 2) * 2 + (kw % 2)
                tap = x_ref[0, p, pl.ds(h + kh // 2, 1), pl.ds(kw // 2, Wo), :][0]
            acc = acc + jnp.dot(tap.astype(MXU_DTYPE),
                                w_ref[kh * 3 + kw].astype(MXU_DTYPE),
                                preferred_element_type=jnp.float32)
    y_ref[...] = acc[None, None]
    s1 = jnp.sum(acc, axis=0, keepdims=True)
    s2 = jnp.sum(acc * acc, axis=0, keepdims=True)
    part = jnp.concatenate([s1, s2], axis=0)[None]          # (1, 2, Cout)

    @pl.when(h == 0)
    def _():
        st_ref[...] = jnp.zeros_like(st_ref)
    st_ref[...] += part


def conv3x3_bn_stats(x_nhwc, w9, stride):
    """3x3 conv, padding=1, dense (block-diagonal for grouped) weights w9: (9, Cin, Cout).

    Returns pre-BN output (N, Ho, Wo, Cout) and per-sample stats (N, 2, Cout).
    """
    N, H, W, Cin = x_nhwc.shape
    Cout = w9.shape[2]
    Ho = (H - 1) // stride + 1
    Wo = (W - 1) // stride + 1
    xp = jnp.pad(x_nhwc, ((0, 0), (1, 1), (1, 1), (0, 0)))

    if stride == 1:
        xin = xp
        x_spec = pl.BlockSpec((1, H + 2, W + 2, Cin), lambda n, h: (n, 0, 0, 0))
    else:
        # even/odd phase split so the kernel only ever does contiguous slices
        assert H % 2 == 0 and W % 2 == 0, "stride-2 path assumes even spatial dims"
        Hc, Wc = (H + 2) // 2, (W + 2) // 2
        xin = xp.reshape(N, Hc, 2, Wc, 2, Cin).transpose(0, 2, 4, 1, 3, 5)
        xin = xin.reshape(N, 4, Hc, Wc, Cin)
        x_spec = pl.BlockSpec((1, 4, Hc, Wc, Cin), lambda n, h: (n, 0, 0, 0, 0))

    y, st = pl.pallas_call(
        functools.partial(_conv3x3_stats_kernel, stride=stride, Ho=Ho, Wo=Wo),
        grid=(N, Ho),
        in_specs=[x_spec, pl.BlockSpec((9, Cin, Cout), lambda n, h: (0, 0, 0))],
        out_specs=[
            pl.BlockSpec((1, 1, Wo, Cout), lambda n, h: (n, h, 0, 0)),
            pl.BlockSpec((1, 2, Cout), lambda n, h: (n, 0, 0)),
        ],
        out_shape=[
            jax.ShapeDtypeStruct((N, Ho, Wo, Cout), jnp.float32),
            jax.ShapeDtypeStruct((N, 2, Cout), jnp.float32),
        ],
        compiler_params=pltpu.CompilerParams(
            dimension_semantics=("parallel", "arbitrary"),
            vmem_limit_bytes=VMEM_LIMIT),
        cost_estimate=pl.CostEstimate(
            flops=2 * 9 * N * Ho * Wo * Cin * Cout, transcendentals=0,
            bytes_accessed=4 * (N * (H + 2) * (W + 2) * Cin + 9 * Cin * Cout
                                + N * Ho * Wo * Cout)),
    )(xin, w9)
    # TODO(synk): per-sample whole-image input blocks need spatial tiling for very large H*W.
    return y, st


# ---------------------------------------------------------------------------
# Kernel 4: SE block -> emits only the (N, 1, C) channel scale (applied inside conv3)
# ---------------------------------------------------------------------------

def _se_scale_kernel(x_ref, w1_ref, b1_ref, w2_ref, b2_ref, o_ref):
    pooled = jnp.mean(x_ref[0], axis=0, keepdims=True)                       # (1, C)
    h = jnp.dot(pooled, w1_ref[...], preferred_element_type=jnp.float32) + b1_ref[...]
    h = jnp.maximum(h, 0.0)
    s = jnp.dot(h, w2_ref[...], preferred_element_type=jnp.float32) + b2_ref[...]
    o_ref[...] = jax.nn.sigmoid(s)[None]


def se_scale(x3, w1, b1, w2, b2):
    N, HW, C = x3.shape
    Cse = w1.shape[1]
    return pl.pallas_call(
        _se_scale_kernel,
        grid=(N,),
        in_specs=[
            pl.BlockSpec((1, HW, C), lambda n: (n, 0, 0)),
            pl.BlockSpec((C, Cse), lambda n: (0, 0)),
            pl.BlockSpec((1, Cse), lambda n: (0, 0)),
            pl.BlockSpec((Cse, C), lambda n: (0, 0)),
            pl.BlockSpec((1, C), lambda n: (0, 0)),
        ],
        out_specs=pl.BlockSpec((1, 1, C), lambda n: (n, 0, 0)),
        out_shape=jax.ShapeDtypeStruct((N, 1, C), jnp.float32),
        compiler_params=pltpu.CompilerParams(
            dimension_semantics=("parallel",), vmem_limit_bytes=VMEM_LIMIT),
    )(x3, w1, b1, w2, b2)


# ---------------------------------------------------------------------------
# Kernel 5: head (global avg pool + linear)
# ---------------------------------------------------------------------------

def _head_kernel(x_ref, w_ref, b_ref, o_ref):
    pooled = jnp.mean(x_ref[...], axis=1)                                    # (N, C)
    o_ref[...] = jnp.dot(pooled, w_ref[...],
                         preferred_element_type=jnp.float32) + b_ref[...]


def head(x3, w, b):
    N = x3.shape[0]
    ncls = w.shape[1]
    return pl.pallas_call(
        _head_kernel,
        out_shape=jax.ShapeDtypeStruct((N, ncls), jnp.float32),
    )(x3, w, b)


# ---------------------------------------------------------------------------
# glue: BN stat folding, block-diagonal weights, params, forward
# ---------------------------------------------------------------------------

def _bn_scale_shift(stats, count, gamma, beta):
    """Fold batch-norm (batch stats, biased var) into a single scale/shift per channel."""
    total = jnp.sum(stats, axis=0)                     # (2, C)
    mean = total[0] / count
    var = total[1] / count - mean * mean
    scale = gamma * lax.rsqrt(var + EPS)
    shift = beta - mean * scale
    return scale, shift


def _block_diag(w):
    """(9, G, Cg_in, Cg_out) grouped weights -> (9, G*Cg_in, G*Cg_out) block-diagonal."""
    t, G, ci, co = w.shape
    eye = jnp.eye(G, dtype=w.dtype)
    dense = jnp.einsum('gh,tgij->tgihj', eye, w)
    return dense.reshape(t, G * ci, G * co)


def init_params(key, cfg, num_classes, bev_width):
    keys = iter(jax.random.split(key, 256))

    def conv_w(shape, fan_in):
        return jax.random.normal(next(keys), shape, jnp.float32) * jnp.sqrt(2.0 / fan_in)

    params = {}
    params['stem_w'] = conv_w((9, 3, bev_width), 27)
    params['stem_g'] = jnp.ones((bev_width,), jnp.float32)
    params['stem_b'] = jnp.zeros((bev_width,), jnp.float32)

    blocks = []
    in_planes = bev_width
    for idx in range(4):
        depth, width, stride0 = cfg['depths'][idx], cfg['widths'][idx], cfg['strides'][idx]
        for i in range(depth):
            s = stride0 if i == 0 else 1
            w_in, w_out = in_planes, width
            w_b = int(round(w_out * cfg['bottleneck_ratio']))
            gw = cfg['group_width']
            G = w_b // gw
            Cg = w_b // G
            bp = {'stride': s}
            bp['w1'] = conv_w((w_in, w_b), w_in)
            bp['bn1_g'] = jnp.ones((w_b,), jnp.float32)
            bp['bn1_b'] = jnp.zeros((w_b,), jnp.float32)
            bp['w2'] = _block_diag(conv_w((9, G, Cg, Cg), 9 * Cg))    # (9, w_b, w_b)
            bp['bn2_g'] = jnp.ones((w_b,), jnp.float32)
            bp['bn2_b'] = jnp.zeros((w_b,), jnp.float32)
            if cfg['se_ratio'] > 0:
                w_se = max(1, int(round(w_in * cfg['se_ratio'])))
                bp['se_w1'] = conv_w((w_b, w_se), w_b)
                bp['se_b1'] = jax.random.normal(next(keys), (1, w_se), jnp.float32) * 0.1
                bp['se_w2'] = conv_w((w_se, w_b), w_se)
                bp['se_b2'] = jax.random.normal(next(keys), (1, w_b), jnp.float32) * 0.1
            else:
                bp['se_w1'] = None
            bp['w3'] = conv_w((w_b, w_out), w_b)
            bp['bn3_g'] = jnp.ones((w_out,), jnp.float32)
            bp['bn3_b'] = jnp.zeros((w_out,), jnp.float32)
            if s != 1 or w_in != w_out:
                bp['ws'] = conv_w((w_in, w_out), w_in)
                bp['bns_g'] = jnp.ones((w_out,), jnp.float32)
                bp['bns_b'] = jnp.zeros((w_out,), jnp.float32)
            else:
                bp['ws'] = None
            blocks.append(bp)
            in_planes = width
    params['blocks'] = blocks
    params['lin_w'] = conv_w((cfg['widths'][-1], num_classes), cfg['widths'][-1])
    params['lin_b'] = jax.random.normal(next(keys), (1, num_classes), jnp.float32) * 0.1
    return params


def block_forward(x, bp):
    # x: (N, H, W, Cin) NHWC
    N, H, W, Cin = x.shape
    s = bp['stride']
    w_b = bp['w1'].shape[1]
    M = N * H * W

    # conv1 (1x1) + bn1 + relu  (two-pass BN)
    y1, st1 = matmul_bn_stats(x.reshape(M, Cin), bp['w1'])
    sc1, sh1 = _bn_scale_shift(st1, M, bp['bn1_g'], bp['bn1_b'])
    out1 = bn_apply(y1, sc1, sh1).reshape(N, H, W, w_b)

    # conv2 (grouped 3x3 via block-diagonal dense weights) + bn2 + relu
    y2, st2 = conv3x3_bn_stats(out1, bp['w2'], s)
    _, Ho, Wo, _ = y2.shape
    M2 = N * Ho * Wo
    sc2, sh2 = _bn_scale_shift(st2, M2, bp['bn2_g'], bp['bn2_b'])
    out2 = bn_apply(y2.reshape(M2, w_b), sc2, sh2)                    # (M2, w_b)

    # SE: compute per-sample channel scale only; application is fused into conv3
    scale = None
    if bp['se_w1'] is not None:
        scale = se_scale(out2.reshape(N, Ho * Wo, w_b),
                         bp['se_w1'], bp['se_b1'], bp['se_w2'], bp['se_b2'])

    # conv3 (1x1, with fused SE scale) + bn3, shortcut (+BN), residual add + relu
    w_out = bp['w3'].shape[1]
    y3, st3 = matmul_bn_stats(out2, bp['w3'], se_scale=scale, hw_per_sample=Ho * Wo)
    sc3, sh3 = _bn_scale_shift(st3, M2, bp['bn3_g'], bp['bn3_b'])

    if bp['ws'] is not None:
        # TODO(synk): fold the stride-s spatial subsampling into the BlockSpec index_map.
        xs = x[:, ::s, ::s, :]
        ysc, stsc = matmul_bn_stats(xs.reshape(M2, Cin), bp['ws'])
        scs, shs = _bn_scale_shift(stsc, M2, bp['bns_g'], bp['bns_b'])
        out = bn_apply(y3, sc3, sh3, residual=ysc, res_scale=scs, res_shift=shs)
    else:
        out = bn_apply(y3, sc3, sh3, residual=x.reshape(M, Cin))
    return out.reshape(N, Ho, Wo, w_out)


def regnet_forward(x_nchw, params):
    # PyTorch-style NCHW input -> NHWC internally (channels in the lane dimension)
    x = jnp.transpose(x_nchw, (0, 2, 3, 1)).astype(jnp.float32)
    N, H, W, _ = x.shape
    bev = params['stem_w'].shape[2]

    # stem: 3x3 conv (stride 1, pad 1) + bn + relu
    y, st = conv3x3_bn_stats(x, params['stem_w'], 1)
    M = N * H * W
    sc, sh = _bn_scale_shift(st, M, params['stem_g'], params['stem_b'])
    out = bn_apply(y.reshape(M, bev), sc, sh).reshape(N, H, W, bev)

    # layers 1..4
    for bp in params['blocks']:
        out = block_forward(out, bp)

    # global avg pool + linear
    Nf, Hf, Wf, Cf = out.shape
    return head(out.reshape(Nf, Hf * Wf, Cf), params['lin_w'], params['lin_b'])


# ----------------------------- demo -----------------------------

if __name__ == "__main__":
    # Small RegNet-Y style config (small stand-in for the original cfg).
    cfg = {
        'depths': [1, 1, 2, 1],
        'widths': [8, 16, 32, 64],
        'strides': [1, 1, 2, 2],
        'group_width': 8,
        'bottleneck_ratio': 1,
        'se_ratio': 0.25,
    }
    BEV_WIDTH = 16     # stem width (the original uses 64 when patch_flag=True)
    NUM_CLASSES = 1    # patch_flag=True -> num_classes = 1

    key = jax.random.PRNGKey(0)
    pkey, xkey = jax.random.split(key)
    params = init_params(pkey, cfg, NUM_CLASSES, BEV_WIDTH)

    x = jax.random.normal(xkey, (2, 3, 16, 16), jnp.float32)   # NCHW, like PyTorch
    out = regnet_forward(x, params)
    out = jax.block_until_ready(out)
    assert out.shape == (2, NUM_CLASSES) and out.dtype == jnp.float32
    assert bool(jnp.all(jnp.isfinite(out)))
    print("KERNEL_OK")
</pallas_src>

<mosaic_0001>
module attributes {stable_mosaic.version = 11 : i64} {
  func.func @_conv3x3_stats_kernel(%arg0: i32, %arg1: i32, %arg2: memref<1x18x18x3xf32, #tpu.memory_space<vmem>>, %arg3: memref<9x3x16xf32, #tpu.memory_space<vmem>>, %arg4: memref<1x1x16x16xf32, #tpu.memory_space<vmem>>, %arg5: memref<1x2x16xf32, #tpu.memory_space<vmem>>) attributes {dimension_semantics = [#tpu.dimension_semantics<parallel>, #tpu.dimension_semantics<arbitrary>], iteration_bounds = array<i64: 2, 16>, scalar_prefetch = 0 : i64, scratch_operands = 0 : i64, tpu.core_type = #tpu.core_type<tc>, window_params = [{transform_indices = @transform_0, window_bounds = array<i64: 1, 18, 18, 3>}, {pipeline_mode = #tpu.pipeline_mode<synchronous>, transform_indices = @transform_1, window_bounds = array<i64: 9, 3, 16>}, {transform_indices = @transform_2, window_bounds = array<i64: 1, 1, 16, 16>}, {transform_indices = @transform_3, window_bounds = array<i64: 1, 2, 16>}]} {
    %cst = arith.constant 0.000000e+00 : f32
    %0 = vector.broadcast %cst : f32 to vector<16x16xf32>
    %c0_i32 = arith.constant 0 : i32
    %1 = arith.addi %arg1, %c0_i32 : i32
    %c0 = arith.constant 0 : index
    %2 = arith.index_cast %1 : i32 to index
    %c0_0 = arith.constant 0 : index
    %c0_1 = arith.constant 0 : index
    %3 = vector.load %arg2[%c0, %2, %c0_0, %c0_1] : memref<1x18x18x3xf32, #tpu.memory_space<vmem>>, vector<1x1x16x3xf32>
    %4 = vector.shape_cast %3 : vector<1x1x16x3xf32> to vector<1x16x3xf32>
    %5 = vector.shape_cast %4 : vector<1x16x3xf32> to vector<16x3xf32>
    %6 = arith.truncf %5 : vector<16x3xf32> to vector<16x3xbf16>
    %c0_2 = arith.constant 0 : index
    %c0_3 = arith.constant 0 : index
    %c0_4 = arith.constant 0 : index
    %7 = vector.load %arg3[%c0_2, %c0_3, %c0_4] : memref<9x3x16xf32, #tpu.memory_space<vmem>>, vector<1x3x16xf32>
    %8 = vector.shape_cast %7 : vector<1x3x16xf32> to vector<3x16xf32>
    %9 = arith.truncf %8 : vector<3x16xf32> to vector<3x16xbf16>
    %cst_5 = arith.constant dense<0.000000e+00> : vector<16x16xf32>
    %10 = tpu.matmul %6, %9, %cst_5 {dimension_numbers = #tpu.dot_dimension_numbers<[1], [0], [0], [1], [0, 0, 1, 1], [], []>} : vector<16x3xbf16>, vector<3x16xbf16>, vector<16x16xf32> -> vector<16x16xf32>
    %11 = arith.addf %0, %10 : vector<16x16xf32>
    %c0_i32_6 = arith.constant 0 : i32
    %12 = arith.addi %arg1, %c0_i32_6 : i32
    %c0_7 = arith.constant 0 : index
    %13 = arith.index_cast %12 : i32 to index
    %c1 = arith.constant 1 : index
    %c0_8 = arith.constant 0 : index
    %14 = vector.load %arg2[%c0_7, %13, %c1, %c0_8] : memref<1x18x18x3xf32, #tpu.memory_space<vmem>>, vector<1x1x16x3xf32>
    %15 = vector.shape_cast %14 : vector<1x1x16x3xf32> to vector<1x16x3xf32>
    %16 = vector.shape_cast %15 : vector<1x16x3xf32> to vector<16x3xf32>
    %17 = arith.truncf %16 : vector<16x3xf32> to vector<16x3xbf16>
    %c1_9 = arith.constant 1 : index
    %c0_10 = arith.constant 0 : index
    %c0_11 = arith.constant 0 : index
    %18 = vector.load %arg3[%c1_9, %c0_10, %c0_11] : memref<9x3x16xf32, #tpu.memory_space<vmem>>, vector<1x3x16xf32>
    %19 = vector.shape_cast %18 : vector<1x3x16xf32> to vector<3x16xf32>
    %20 = arith.truncf %19 : vector<3x16xf32> to vector<3x16xbf16>
    %cst_12 = arith.constant dense<0.000000e+00> : vector<16x16xf32>
    %21 = tpu.matmul %17, %20, %cst_12 {dimension_numbers = #tpu.dot_dimension_numbers<[1], [0], [0], [1], [0, 0, 1, 1], [], []>} : vector<16x3xbf16>, vector<3x16xbf16>, vector<16x16xf32> -> vector<16x16xf32>
    %22 = arith.addf %11, %21 : vector<16x16xf32>
    %c0_i32_13 = arith.constant 0 : i32
    %23 = arith.addi %arg1, %c0_i32_13 : i32
    %c0_14 = arith.constant 0 : index
    %24 = arith.index_cast %23 : i32 to index
    %c2 = arith.constant 2 : index
    %c0_15 = arith.constant 0 : index
    %25 = vector.load %arg2[%c0_14, %24, %c2, %c0_15] : memref<1x18x18x3xf32, #tpu.memory_space<vmem>>, vector<1x1x16x3xf32>
    %26 = vector.shape_cast %25 : vector<1x1x16x3xf32> to vector<1x16x3xf32>
    %27 = vector.shape_cast %26 : vector<1x16x3xf32> to vector<16x3xf32>
    %28 = arith.truncf %27 : vector<16x3xf32> to vector<16x3xbf16>
    %c2_16 = arith.constant 2 : index
    %c0_17 = arith.constant 0 : index
    %c0_18 = arith.constant 0 : index
    %29 = vector.load %arg3[%c2_16, %c0_17, %c0_18] : memref<9x3x16xf32, #tpu.memory_space<vmem>>, vector<1x3x16xf32>
    %30 = vector.shape_cast %29 : vector<1x3x16xf32> to vector<3x16xf32>
    %31 = arith.truncf %30 : vector<3x16xf32> to vector<3x16xbf16>
    %cst_19 = arith.constant dense<0.000000e+00> : vector<16x16xf32>
    %32 = tpu.matmul %28, %31, %cst_19 {dimension_numbers = #tpu.dot_dimension_numbers<[1], [0], [0], [1], [0, 0, 1, 1], [], []>} : vector<16x3xbf16>, vector<3x16xbf16>, vector<16x16xf32> -> vector<16x16xf32>
    %33 = arith.addf %22, %32 : vector<16x16xf32>
    %c1_i32 = arith.constant 1 : i32
    %34 = arith.addi %arg1, %c1_i32 : i32
    %c0_20 = arith.constant 0 : index
    %35 = arith.index_cast %34 : i32 to index
    %c0_21 = arith.constant 0 : index
    %c0_22 = arith.constant 0 : index
    %36 = vector.load %arg2[%c0_20, %35, %c0_21, %c0_22] : memref<1x18x18x3xf32, #tpu.memory_space<vmem>>, vector<1x1x16x3xf32>
    %37 = vector.shape_cast %36 : vector<1x1x16x3xf32> to vector<1x16x3xf32>
    %38 = vector.shape_cast %37 : vector<1x16x3xf32> to vector<16x3xf32>
    %39 = arith.truncf %38 : vector<16x3xf32> to vector<16x3xbf16>
    %c3 = arith.constant 3 : index
    %c0_23 = arith.constant 0 : index
    %c0_24 = arith.constant 0 : index
    %40 = vector.load %arg3[%c3, %c0_23, %c0_24] : memref<9x3x16xf32, #tpu.memory_space<vmem>>, vector<1x3x16xf32>
    %41 = vector.shape_cast %40 : vector<1x3x16xf32> to vector<3x16xf32>
    %42 = arith.truncf %41 : vector<3x16xf32> to vector<3x16xbf16>
    %cst_25 = arith.constant dense<0.000000e+00> : vector<16x16xf32>
    %43 = tpu.matmul %39, %42, %cst_25 {dimension_numbers = #tpu.dot_dimension_numbers<[1], [0], [0], [1], [0, 0, 1, 1], [], []>} : vector<16x3xbf16>, vector<3x16xbf16>, vector<16x16xf32> -> vector<16x16xf32>
    %44 = arith.addf %33, %43 : vector<16x16xf32>
    %c1_i32_26 = arith.constant 1 : i32
    %45 = arith.addi %arg1, %c1_i32_26 : i32
    %c0_27 = arith.constant 0 : index
    %46 = arith.index_cast %45 : i32 to index
    %c1_28 = arith.constant 1 : index
    %c0_29 = arith.constant 0 : index
    %47 = vector.load %arg2[%c0_27, %46, %c1_28, %c0_29] : memref<1x18x18x3xf32, #tpu.memory_space<vmem>>, vector<1x1x16x3xf32>
    %48 = vector.shape_cast %47 : vector<1x1x16x3xf32> to vector<1x16x3xf32>
    %49 = vector.shape_cast %48 : vector<1x16x3xf32> to vector<16x3xf32>
    %50 = arith.truncf %49 : vector<16x3xf32> to vector<16x3xbf16>
    %c4 = arith.constant 4 : index
    %c0_30 = arith.constant 0 : index
    %c0_31 = arith.constant 0 : index
    %51 = vector.load %arg3[%c4, %c0_30, %c0_31] : memref<9x3x16xf32, #tpu.memory_space<vmem>>, vector<1x3x16xf32>
    %52 = vector.shape_cast %51 : vector<1x3x16xf32> to vector<3x16xf32>
    %53 = arith.truncf %52 : vector<3x16xf32> to vector<3x16xbf16>
    %cst_32 = arith.constant dense<0.000000e+00> : vector<16x16xf32>
    %54 = tpu.matmul %50, %53, %cst_32 {dimension_numbers = #tpu.dot_dimension_numbers<[1], [0], [0], [1], [0, 0, 1, 1], [], []>} : vector<16x3xbf16>, vector<3x16xbf16>, vector<16x16xf32> -> vector<16x16xf32>
    %55 = arith.addf %44, %54 : vector<16x16xf32>
    %c1_i32_33 = arith.constant 1 : i32
    %56 = arith.addi %arg1, %c1_i32_33 : i32
    %c0_34 = arith.constant 0 : index
    %57 = arith.index_cast %56 : i32 to index
    %c2_35 = arith.constant 2 : index
    %c0_36 = arith.constant 0 : index
    %58 = vector.load %arg2[%c0_34, %57, %c2_35, %c0_36] : memref<1x18x18x3xf32, #tpu.memory_space<vmem>>, vector<1x1x16x3xf32>
    %59 = vector.shape_cast %58 : vector<1x1x16x3xf32> to vector<1x16x3xf32>
    %60 = vector.shape_cast %59 : vector<1x16x3xf32> to vector<16x3xf32>
    %61 = arith.truncf %60 : vector<16x3xf32> to vector<16x3xbf16>
    %c5 = arith.constant 5 : index
    %c0_37 = arith.constant 0 : index
    %c0_38 = arith.constant 0 : index
    %62 = vector.load %arg3[%c5, %c0_37, %c0_38] : memref<9x3x16xf32, #tpu.memory_space<vmem>>, vector<1x3x16xf32>
    %63 = vector.shape_cast %62 : vector<1x3x16xf32> to vector<3x16xf32>
    %64 = arith.truncf %63 : vector<3x16xf32> to vector<3x16xbf16>
    %cst_39 = arith.constant dense<0.000000e+00> : vector<16x16xf32>
    %65 = tpu.matmul %61, %64, %cst_39 {dimension_numbers = #tpu.dot_dimension_numbers<[1], [0], [0], [1], [0, 0, 1, 1], [], []>} : vector<16x3xbf16>, vector<3x16xbf16>, vector<16x16xf32> -> vector<16x16xf32>
    %66 = arith.addf %55, %65 : vector<16x16xf32>
    %c2_i32 = arith.constant 2 : i32
    %67 = arith.addi %arg1, %c2_i32 : i32
    %c0_40 = arith.constant 0 : index
    %68 = arith.index_cast %67 : i32 to index
    %c0_41 = arith.constant 0 : index
    %c0_42 = arith.constant 0 : index
    %69 = vector.load %arg2[%c0_40, %68, %c0_41, %c0_42] : memref<1x18x18x3xf32, #tpu.memory_space<vmem>>, vector<1x1x16x3xf32>
    %70 = vector.shape_cast %69 : vector<1x1x16x3xf32> to vector<1x16x3xf32>
    %71 = vector.shape_cast %70 : vector<1x16x3xf32> to vector<16x3xf32>
    %72 = arith.truncf %71 : vector<16x3xf32> to vector<16x3xbf16>
    %c6 = arith.constant 6 : index
    %c0_43 = arith.constant 0 : index
    %c0_44 = arith.constant 0 : index
    %73 = vector.load %arg3[%c6, %c0_43, %c0_44] : memref<9x3x16xf32, #tpu.memory_space<vmem>>, vector<1x3x16xf32>
    %74 = vector.shape_cast %73 : vector<1x3x16xf32> to vector<3x16xf32>
    %75 = arith.truncf %74 : vector<3x16xf32> to vector<3x16xbf16>
    %cst_45 = arith.constant dense<0.000000e+00> : vector<16x16xf32>
    %76 = tpu.matmul %72, %75, %cst_45 {dimension_numbers = #tpu.dot_dimension_numbers<[1], [0], [0], [1], [0, 0, 1, 1], [], []>} : vector<16x3xbf16>, vector<3x16xbf16>, vector<16x16xf32> -> vector<16x16xf32>
    %77 = arith.addf %66, %76 : vector<16x16xf32>
    %c2_i32_46 = arith.constant 2 : i32
    %78 = arith.addi %arg1, %c2_i32_46 : i32
    %c0_47 = arith.constant 0 : index
    %79 = arith.index_cast %78 : i32 to index
    %c1_48 = arith.constant 1 : index
    %c0_49 = arith.constant 0 : index
    %80 = vector.load %arg2[%c0_47, %79, %c1_48, %c0_49] : memref<1x18x18x3xf32, #tpu.memory_space<vmem>>, vector<1x1x16x3xf32>
    %81 = vector.shape_cast %80 : vector<1x1x16x3xf32> to vector<1x16x3xf32>
    %82 = vector.shape_cast %81 : vector<1x16x3xf32> to vector<16x3xf32>
    %83 = arith.truncf %82 : vector<16x3xf32> to vector<16x3xbf16>
    %c7 = arith.constant 7 : index
    %c0_50 = arith.constant 0 : index
    %c0_51 = arith.constant 0 : index
    %84 = vector.load %arg3[%c7, %c0_50, %c0_51] : memref<9x3x16xf32, #tpu.memory_space<vmem>>, vector<1x3x16xf32>
    %85 = vector.shape_cast %84 : vector<1x3x16xf32> to vector<3x16xf32>
    %86 = arith.truncf %85 : vector<3x16xf32> to vector<3x16xbf16>
    %cst_52 = arith.constant dense<0.000000e+00> : vector<16x16xf32>
    %87 = tpu.matmul %83, %86, %cst_52 {dimension_numbers = #tpu.dot_dimension_numbers<[1], [0], [0], [1], [0, 0, 1, 1], [], []>} : vector<16x3xbf16>, vector<3x16xbf16>, vector<16x16xf32> -> vector<16x16xf32>
    %88 = arith.addf %77, %87 : vector<16x16xf32>
    %c2_i32_53 = arith.constant 2 : i32
    %89 = arith.addi %arg1, %c2_i32_53 : i32
    %c0_54 = arith.constant 0 : index
    %90 = arith.index_cast %89 : i32 to index
    %c2_55 = arith.constant 2 : index
    %c0_56 = arith.constant 0 : index
    %91 = vector.load %arg2[%c0_54, %90, %c2_55, %c0_56] : memref<1x18x18x3xf32, #tpu.memory_space<vmem>>, vector<1x1x16x3xf32>
    %92 = vector.shape_cast %91 : vector<1x1x16x3xf32> to vector<1x16x3xf32>
    %93 = vector.shape_cast %92 : vector<1x16x3xf32> to vector<16x3xf32>
    %94 = arith.truncf %93 : vector<16x3xf32> to vector<16x3xbf16>
    %c8 = arith.constant 8 : index
    %c0_57 = arith.constant 0 : index
    %c0_58 = arith.constant 0 : index
    %95 = vector.load %arg3[%c8, %c0_57, %c0_58] : memref<9x3x16xf32, #tpu.memory_space<vmem>>, vector<1x3x16xf32>
    %96 = vector.shape_cast %95 : vector<1x3x16xf32> to vector<3x16xf32>
    %97 = arith.truncf %96 : vector<3x16xf32> to vector<3x16xbf16>
    %cst_59 = arith.constant dense<0.000000e+00> : vector<16x16xf32>
    %98 = tpu.matmul %94, %97, %cst_59 {dimension_numbers = #tpu.dot_dimension_numbers<[1], [0], [0], [1], [0, 0, 1, 1], [], []>} : vector<16x3xbf16>, vector<3x16xbf16>, vector<16x16xf32> -> vector<16x16xf32>
    %99 = arith.addf %88, %98 : vector<16x16xf32>
    %100 = vector.shape_cast %99 : vector<16x16xf32> to vector<1x1x16x16xf32>
    %c0_60 = arith.constant 0 : index
    %c0_61 = arith.constant 0 : index
    %c0_62 = arith.constant 0 : index
    %c0_63 = arith.constant 0 : index
    %101 = vector.load %arg4[%c0_60, %c0_61, %c0_62, %c0_63] : memref<1x1x16x16xf32, #tpu.memory_space<vmem>>, vector<1x1x16x16xf32>
    tpu.vector_store %arg4[%c0_60, %c0_61, %c0_62, %c0_63], %100 {strides = array<i32>} : memref<1x1x16x16xf32, #tpu.memory_space<vmem>>, vector<1x1x16x16xf32>,
    %cst_64 = arith.constant dense<0.000000e+00> : vector<16xf32>
    %102 = vector.multi_reduction <add>, %99, %cst_64 [0] : vector<16x16xf32> to vector<16xf32>
    %103 = vector.shape_cast %102 : vector<16xf32> to vector<1x16xf32>
    %104 = arith.mulf %99, %99 : vector<16x16xf32>
    %cst_65 = arith.constant dense<0.000000e+00> : vector<16xf32>
    %105 = vector.multi_reduction <add>, %104, %cst_65 [0] : vector<16x16xf32> to vector<16xf32>
    %106 = vector.shape_cast %105 : vector<16xf32> to vector<1x16xf32>
    %107 = tpu.concatenate %103, %106 in 0 : vector<1x16xf32>, vector<1x16xf32> -> vector<2x16xf32>
    %108 = vector.shape_cast %107 : vector<2x16xf32> to vector<1x2x16xf32>
    %c0_i32_66 = arith.constant 0 : i32
    %109 = arith.cmpi eq, %arg1, %c0_i32_66 : i32
    %110 = arith.extui %109 : i1 to i32
    %c0_i32_67 = arith.constant 0 : i32
    %111 = arith.cmpi ne, %110, %c0_i32_67 : i32
    scf.if %111 {
      %cst_74 = arith.constant 0.000000e+00 : f32
      %115 = vector.broadcast %cst_74 : f32 to vector<1x2x16xf32>
      %c0_75 = arith.constant 0 : index
      %c0_76 = arith.constant 0 : index
      %c0_77 = arith.constant 0 : index
      %116 = vector.load %arg5[%c0_75, %c0_76, %c0_77] : memref<1x2x16xf32, #tpu.memory_space<vmem>>, vector<1x2x16xf32>
      tpu.vector_store %arg5[%c0_75, %c0_76, %c0_77], %115 {strides = array<i32>} : memref<1x2x16xf32, #tpu.memory_space<vmem>>, vector<1x2x16xf32>,
    } else {
    }
    %c0_68 = arith.constant 0 : index
    %c0_69 = arith.constant 0 : index
    %c0_70 = arith.constant 0 : index
    %112 = vector.load %arg5[%c0_68, %c0_69, %c0_70] : memref<1x2x16xf32, #tpu.memory_space<vmem>>, vector<1x2x16xf32>
    %113 = arith.addf %112, %108 : vector<1x2x16xf32>
    %c0_71 = arith.constant 0 : index
    %c0_72 = arith.constant 0 : index
    %c0_73 = arith.constant 0 : index
    %114 = vector.load %arg5[%c0_71, %c0_72, %c0_73] : memref<1x2x16xf32, #tpu.memory_space<vmem>>, vector<1x2x16xf32>
    tpu.vector_store %arg5[%c0_71, %c0_72, %c0_73], %113 {strides = array<i32>} : memref<1x2x16xf32, #tpu.memory_space<vmem>>, vector<1x2x16xf32>,
    return
  }
  func.func @transform_0(%arg0: i32, %arg1: i32) -> (i32, i32, i32, i32) {
    %c0_i32 = arith.constant 0 : i32
    %c0_i32_0 = arith.constant 0 : i32
    %c0_i32_1 = arith.constant 0 : i32
    %c0_i32_2 = arith.constant 0 : i32
    return %arg0, %c0_i32, %c0_i32_0, %c0_i32_1 : i32, i32, i32, i32
  }
  func.func @transform_1(%arg0: i32, %arg1: i32) -> (i32, i32, i32) {
    %c0_i32 = arith.constant 0 : i32
    %c0_i32_0 = arith.constant 0 : i32
    %c0_i32_1 = arith.constant 0 : i32
    %c0_i32_2 = arith.constant 0 : i32
    return %c0_i32, %c0_i32_0, %c0_i32_1 : i32, i32, i32
  }
  func.func @transform_2(%arg0: i32, %arg1: i32) -> (i32, i32, i32, i32) {
    %c0_i32 = arith.constant 0 : i32
    %c0_i32_0 = arith.constant 0 : i32
    %c0_i32_1 = arith.constant 0 : i32
    return %arg0, %arg1, %c0_i32, %c0_i32_0 : i32, i32, i32, i32
  }
  func.func @transform_3(%arg0: i32, %arg1: i32) -> (i32, i32, i32) {
    %c0_i32 = arith.constant 0 : i32
    %c0_i32_0 = arith.constant 0 : i32
    %c0_i32_1 = arith.constant 0 : i32
    return %arg0, %c0_i32, %c0_i32_0 : i32, i32, i32
  }
}

</mosaic_0001>

<llo_original>
// kernel: tpu_custom_call.1
$region0: #{tpu_custom_call.1}
  #allocation0 [shape = 'u32[]', space=smem, size = 0x4, offset = 0x4, fixed_abs, tag = 'smem constant byte address 0x4 - core index']
  #allocation1 [shape = 'u32[72,128]{1,0:T(1,128)}', space=vmem, size = 0x9000, scoped, tag = 'internal scratch']
  %s0 = inlined_call_operand.vmem [shape: f32[2,18,18,3], index: 0, kind: input, shape index: {}]
  %s1 = inlined_call_operand.vmem [shape: f32[9,3,16], index: 1, kind: input, shape index: {}]
  %s2 = inlined_call_operand.hbm [shape: f32[2,16,16,16], index: 2, kind: output, shape index: {0}]
  %s3 = inlined_call_operand.hbm [shape: f32[2,2,16], index: 3, kind: output, shape index: {1}]
  %4 = xla_tuple %s2, %s3
  %s5 = sld [smem:[#allocation0]]
  $region53: #{tpu_custom_call.1} parent=0
    _
  %s7 = ssub.s32 1, %s5
  %s8 = scalar_select 0, %s7, %s5
  $region1: #{tpu_custom_call.1} parent=0
    #allocation2 [shape = 'u8[16384]{0}', space=vmem, size = 0x4000, scoped, tag = 'output window, operand 0']
    #allocation3 [shape = 's32[2]{0}', space=sflag, size = 0x8, scoped, tag = 'scoped memory for tpu_custom_call.1']
    #allocation4 [shape = 'u8[2048]{0}', space=vmem, size = 0x800, scoped, tag = 'output window, operand 1']
    #allocation5 [shape = 's32[2]{0}', space=sflag, size = 0x8, scoped, tag = 'scoped memory for tpu_custom_call.1']
    %9 = vsyncpa [#allocation3], 0
    %s10 = scalar_lea.sflag [#allocation3], 1
    %11 = vsyncpa %s10, 0
    %12 = vsyncpa [#allocation5], 0
    %s13 = scalar_lea.sflag [#allocation5], 1
    %14 = vsyncpa %s13, 0
    loop: start=0, step=1, limit=34
    $region2: #{tpu_custom_call.1} parent=1 // loop_pre_header
      _
    $region3: #{tpu_custom_call.1} parent=1 // loop_header
      %s16 = sphi 0, %s20
      %p17 = scmp.ge.s32.totalorder %s16, 34
      %s23 = sphi 0, %s35
      %s24 = sphi 0, %s31
      %s25 = sphi 0, %s23
      %s26 = sphi 0, %s24
      %s27 = sphi 0, %s25
      %s28 = sphi 0, %s26
      %s38 = sphi 0, %s40
      %s41 = sphi 0, %s38
      %s42 = sphi 0, %s41
      %s58 = sphi 0, %s42
      %s62 = sphi 0, %s62
      %s64 = sphi 0, %s62
      %s65 = sphi 0, %s64
      %s79 = sphi 0, %s65
      %s87 = sphi 0, %s89
      %s90 = sphi 0, %s87
      %s91 = sphi 0, %s90
      %s107 = sphi 0, %s91
      %s113 = sphi 0, %s115
      %s116 = sphi 0, %s113
      %s117 = sphi 0, %s116
      %s133 = sphi 0, %s117
    $region4: #{tpu_custom_call.1} parent=1 // loop_header_branch
      %19 = sbr.rel (%p17) target = $region8
    $region5: #{tpu_custom_call.1} parent=1 // loop_body
      %s21 = ssub.s32 %s16, 1
      %s22 = ssub.s32 %s16, 2
      %s29 = sadd.s32 1, %s24
      %p30 = scmp.ge.s32.totalorder %s29, 16
      %s31 = scalar_select %p30, 0, %s29
      %s32 = sadd.s32 1, %s23
      %s33 = scalar_select %p30, %s32, %s23
      %p34 = scmp.ge.s32.totalorder %s33, 2
      %s35 = scalar_select %p34, 0, %s33
      %s36 = ssub.s32 %s23, %s35
      %p37 = scmp.eq.s32.totalorder %s36, 0
      %s39 = sadd.s32 %s38, 1
      %s40 = scalar_select %p37, %s38, %s39
      %p43 = pneg %p37
      %p44 = scmp.eq.s32.totalorder %s16, 31
      %p45 = por %p43, %p44
      %p46 = scmp.ne.s32.totalorder %s38, %s41
      %p47 = scmp.eq.s32.totalorder %s16, 0
      %p48 = por %p46, %p47
      %p49 = scmp.ne.s32.totalorder %s38, %s41
      %p50 = scmp.eq.s32.totalorder %s21, 31
      %p51 = por %p49, %p50
      %p52 = scmp.ne.s32.totalorder %s41, %s42
      %p53 = scmp.eq.s32.totalorder %s21, 0
      %p54 = por %p52, %p53
      %p55 = scmp.ne.s32.totalorder %s41, %s42
      %p56 = scmp.eq.s32.totalorder %s22, 31
      %p57 = por %p55, %p56
      %p59 = scmp.ne.s32.totalorder %s42, %s58
      %p60 = scmp.eq.s32.totalorder %s22, 0
      %p61 = por %p59, %p60
      %s63 = sadd.s32 %s62, 1
      %p66 = scmp.eq.s32.totalorder %s16, 31
      %p67 = scmp.ne.s32.totalorder %s62, %s64
      %p68 = scmp.eq.s32.totalorder %s16, 0
      %p69 = por %p67, %p68
      %p70 = scmp.ne.s32.totalorder %s62, %s64
      %p71 = scmp.eq.s32.totalorder %s21, 31
      %p72 = por %p70, %p71
      %p73 = scmp.ne.s32.totalorder %s64, %s65
      %p74 = scmp.eq.s32.totalorder %s21, 0
      %p75 = por %p73, %p74
      %p76 = scmp.ne.s32.totalorder %s64, %s65
      %p77 = scmp.eq.s32.totalorder %s22, 31
      %p78 = por %p76, %p77
      %p80 = scmp.ne.s32.totalorder %s65, %s79
      %p81 = scmp.eq.s32.totalorder %s22, 0
      %p82 = por %p80, %p81
      %s83 = ssub.s32 %s23, %s35
      %s84 = ssub.s32 %s24, %s31
      %s85 = sor.u32 %s83, %s84
      %p86 = scmp.eq.s32.totalorder %s85, 0
      %s88 = sadd.s32 %s87, 1
      %s89 = scalar_select %p86, %s87, %s88
      %p92 = pneg %p86
      %p93 = scmp.eq.s32.totalorder %s16, 31
      %p94 = por %p92, %p93
      %p95 = scmp.ne.s32.totalorder %s87, %s90
      %p96 = scmp.eq.s32.totalorder %s16, 0
      %p97 = por %p95, %p96
      %p98 = scmp.ne.s32.totalorder %s87, %s90
      %p99 = scmp.eq.s32.totalorder %s21, 31
      %p100 = por %p98, %p99
      %p101 = scmp.ne.s32.totalorder %s90, %s91
      %p102 = scmp.eq.s32.totalorder %s21, 0
      %p103 = por %p101, %p102
      %p104 = scmp.ne.s32.totalorder %s90, %s91
      %p105 = scmp.eq.s32.totalorder %s22, 31
      %p106 = por %p104, %p105
      %p108 = scmp.ne.s32.totalorder %s91, %s107
      %p109 = scmp.eq.s32.totalorder %s22, 0
      %p110 = por %p108, %p109
      %s111 = ssub.s32 %s23, %s35
      %p112 = scmp.eq.s32.totalorder %s111, 0
      %s114 = sadd.s32 %s113, 1
      %s115 = scalar_select %p112, %s113, %s114
      %p118 = pneg %p112
      %p119 = scmp.eq.s32.totalorder %s16, 31
      %p120 = por %p118, %p119
      %p121 = scmp.ne.s32.totalorder %s113, %s116
      %p122 = scmp.eq.s32.totalorder %s16, 0
      %p123 = por %p121, %p122
      %p124 = scmp.ne.s32.totalorder %s113, %s116
      %p125 = scmp.eq.s32.totalorder %s21, 31
      %p126 = por %p124, %p125
      %p127 = scmp.ne.s32.totalorder %s116, %s117
      %p128 = scmp.eq.s32.totalorder %s21, 0
      %p129 = por %p127, %p128
      %p130 = scmp.ne.s32.totalorder %s116, %s117
      %p131 = scmp.eq.s32.totalorder %s22, 31
      %p132 = por %p130, %p131
      %p134 = scmp.ne.s32.totalorder %s117, %s133
      %p135 = scmp.eq.s32.totalorder %s22, 0
      %p136 = por %p134, %p135
      %p137 = scmp.le.s32.totalorder 1, %s16
      %p138 = scmp.lt.s32.totalorder %s16, 33
      %p139 = pnand %p137, %p138
      %p140 = pneg %p139
      // Predicated region
      $region9: #{tpu_custom_call.1} parent=5 // pred_check
        _
      $region10: #{tpu_custom_call.1} parent=5 // pred_check_branch
        %142 = sbr.rel (%p139) target = $region12
      $region11: #{tpu_custom_call.1} parent=5 // pred_region
        %s143 = ssub.s32 %s16, 1
        // Predicated region
        $region13: #{tpu_custom_call.1} parent=11 // pred_check
          %p144 = pneg %p75
        $region14: #{tpu_custom_call.1} parent=11 // pred_check_branch
          %146 = sbr.rel (%p144) target = $region16
        $region15: #{tpu_custom_call.1} parent=11 // pred_region
          _
        $region16: #{tpu_custom_call.1} parent=11 // pred_fallthru
          _
      $region12: #{tpu_custom_call.1} parent=5 // pred_fallthru
        _
      %p147 = scmp.lt.s32.totalorder %s16, 32
      // Predicated region
      $region17: #{tpu_custom_call.1} parent=5 // pred_check
        %p148 = pneg %p147
      $region18: #{tpu_custom_call.1} parent=5 // pred_check_branch
        %150 = sbr.rel (%p148) target = $region20
      $region19: #{tpu_custom_call.1} parent=5 // pred_region
        // Predicated region
        $region21: #{tpu_custom_call.1} parent=19 // pred_check
          %p151 = pneg %p48
        $region22: #{tpu_custom_call.1} parent=19 // pred_check_branch
          %153 = sbr.rel (%p151) target = $region24
        $region23: #{tpu_custom_call.1} parent=19 // pred_region
          %p154 = scmp.lt.s32.totalorder %s23, 1
          %s155 = scalar_select %p154, %s23, 1
          %s156 = smul.addr %s155, 54
          %s157 = smul.addr %s156, 8
          %s158 = scalar_lea.vmem %s0, %s157
        $region24: #{tpu_custom_call.1} parent=19 // pred_fallthru
          _
      $region20: #{tpu_custom_call.1} parent=5 // pred_fallthru
        _
      %p159 = scmp.le.s32.totalorder 1, %s16
      %p160 = scmp.lt.s32.totalorder %s16, 33
      %p161 = pnand %p159, %p160
      %p162 = pneg %p161
      // Predicated region
      $region25: #{tpu_custom_call.1} parent=5 // pred_check
        _
      $region26: #{tpu_custom_call.1} parent=5 // pred_check_branch
        %164 = sbr.rel (%p161) target = $region28
      $region27: #{tpu_custom_call.1} parent=5 // pred_region
        %s165 = ssub.s32 %s16, 1
        %p166 = scmp.lt.s32.totalorder %s25, 1
        %s167 = scalar_select %p166, %s25, 1
        %s168 = smul.addr %s167, 54
        %s169 = smul.addr %s168, 8
        %s170 = scalar_lea.vmem %s0, %s169
        %p171 = pneg %p54
        %p172 = pneg %p51
        %p173 = pneg %p75
        %p174 = pneg %p72
        %p175 = pneg %p103
        %p176 = pneg %p100
        %s177 = sand.u32 %s90, 1
        %s178 = scalar_lea.sflag [#allocation3], %s177
        %s179 = sand.u32 %s90, 1
        %s180 = smul.addr %s179, 16
        %s181 = scalar_lea.vmem [#allocation2], %s180
        %p182 = pneg %p129
        %p183 = pneg %p126
        %s184 = sand.u32 %s116, 1
        %s185 = scalar_lea.sflag [#allocation5], %s184
        %s186 = sand.u32 %s116, 1
        %s187 = smul.addr %s186, 2
        %s188 = scalar_lea.vmem [#allocation4], %s187
        %p189 = scmp.lt.s32.totalorder %s25, 1
        %s190 = scalar_select %p189, %s25, 1
        %s191 = smul.addr %s190, 54
        %s192 = smul.addr %s191, 8
        %s193 = scalar_lea.vmem %s0, %s192
        %s195 = smul.u32 %s26, 24
        %s196 = scalar_lea.vmem %s193, %s195
        %v197 = vld [vmem:[%s196] sm:$0xff]
        %v198 = vld [vmem:[%s196 + $0x8] sm:$0xff]
        %v199 = vpack.c.bf16 %v198, %v197
        %v200 = vld [vmem:[%s1] sm:$0x7]
        %v201 = vpack.c.bf16 %v200, %v200
        %v202 = vld [vmem:[%s196 + $0x1] sm:$0xff]
        %v203 = vld [vmem:[%s196 + $0x9] sm:$0xff]
        %v204 = vpack.c.bf16 %v203, %v202
        %s205 = scalar_lea.vmem %s1, 4
        %v206 = vld [vmem:[%s205] sm:$0x7]
        %v207 = vpack.c.bf16 %v206, %v206
        %vm208 = vcmask 23552
        %v210 = vsel %vm208, %v204, 0
        %vm212 = vcmask 1040384
        %vm213 = vcmask 1041408
        %v214 = vsel %vm212, 4294967295, 65535
        %v215 = vsel %vm213, %v214, 0
        %v217 = vand.u32 %v207, %v215
        %219 = vmatpush.bf16.msra.mxu0 0
        %220 = vmatpush.bf16.msra.mxu0 0
        %221 = vmatpush.bf16.msra.mxu0 0
        %222 = vmatpush.bf16.msra.mxu0 0
        %223 = vmatpush.bf16.msra.mxu0 0
        %224 = vmatpush.bf16.msra.mxu0 0
        %225 = vmatpush.bf16.msra.mxu0 0
        %226 = vmatpush.bf16.msra.mxu0 %v217
        %227 = vmatmul.bf16.gmra.mxu0 %v210
        %v228 = vpop.f32.mrf.mxu0
        %v229 = vadd.f32 0.0, %v228
        %v230 = vpop.f32.mrf.mxu0
        %v231 = vadd.f32 0.0, %v230
        %232 = vdwg.mxu0
        %v234 = vsel %vm208, %v199, 0
        %v237 = vand.u32 %v201, %v215
        %239 = vmatpush.bf16.msra.mxu0 0
        %240 = vmatpush.bf16.msra.mxu0 0
        %241 = vmatpush.bf16.msra.mxu0 0
        %242 = vmatpush.bf16.msra.mxu0 0
        %243 = vmatpush.bf16.msra.mxu0 0
        %244 = vmatpush.bf16.msra.mxu0 0
        %245 = vmatpush.bf16.msra.mxu0 0
        %246 = vmatpush.bf16.msra.mxu0 %v237
        %247 = vmatmul.bf16.gmra.mxu0 %v234
        %v248 = vpop.f32.mrf.mxu0
        %v249 = vadd.f32 %v229, %v248
        %v250 = vpop.f32.mrf.mxu0
        %v251 = vadd.f32 %v231, %v250
        %252 = vdwg.mxu0
        %v253 = vld [vmem:[%s196 + $0x2] sm:$0xff]
        %v254 = vld [vmem:[%s196 + $0xa] sm:$0xff]
        %v255 = vpack.c.bf16 %v254, %v253
        %s256 = scalar_lea.vmem %s1, 8
        %v257 = vld [vmem:[%s256] sm:$0x7]
        %v258 = vpack.c.bf16 %v257, %v257
        %v260 = vsel %vm208, %v255, 0
        %v263 = vand.u32 %v258, %v215
        %265 = vmatpush.bf16.msra.mxu0 0
        %266 = vmatpush.bf16.msra.mxu0 0
        %267 = vmatpush.bf16.msra.mxu0 0
        %268 = vmatpush.bf16.msra.mxu0 0
        %269 = vmatpush.bf16.msra.mxu0 0
        %270 = vmatpush.bf16.msra.mxu0 0
        %271 = vmatpush.bf16.msra.mxu0 0
        %272 = vmatpush.bf16.msra.mxu0 %v263
        %273 = vmatmul.bf16.gmra.mxu0 %v260
        %v274 = vpop.f32.mrf.mxu0
        %v275 = vadd.f32 0.0, %v274
        %v276 = vpop.f32.mrf.mxu0
        %v277 = vadd.f32 0.0, %v276
        %278 = vdwg.mxu0
        %v279 = vadd.f32 %v249, %v275
        %v280 = vadd.f32 %v251, %v277
        %s281 = sadd.s32 %s26, 1
        %s282 = smul.u32 %s281, 24
        %s283 = scalar_lea.vmem %s193, %s282
        %v284 = vld [vmem:[%s283] sm:$0xff]
        %v285 = vld [vmem:[%s283 + $0x8] sm:$0xff]
        %v286 = vpack.c.bf16 %v285, %v284
        %s287 = scalar_lea.vmem %s1, 12
        %v288 = vld [vmem:[%s287] sm:$0x7]
        %v289 = vpack.c.bf16 %v288, %v288
        %v291 = vsel %vm208, %v286, 0
        %v294 = vand.u32 %v289, %v215
        %296 = vmatpush.bf16.msra.mxu0 0
        %297 = vmatpush.bf16.msra.mxu0 0
        %298 = vmatpush.bf16.msra.mxu0 0
        %299 = vmatpush.bf16.msra.mxu0 0
        %300 = vmatpush.bf16.msra.mxu0 0
        %301 = vmatpush.bf16.msra.mxu0 0
        %302 = vmatpush.bf16.msra.mxu0 0
        %303 = vmatpush.bf16.msra.mxu0 %v294
        %304 = vmatmul.bf16.gmra.mxu0 %v291
        %v305 = vpop.f32.mrf.mxu0
        %v306 = vadd.f32 0.0, %v305
        %v307 = vpop.f32.mrf.mxu0
        %v308 = vadd.f32 0.0, %v307
        %309 = vdwg.mxu0
        %v310 = vadd.f32 %v279, %v306
        %v311 = vadd.f32 %v280, %v308
        %v312 = vld [vmem:[%s283 + $0x1] sm:$0xff]
        %v313 = vld [vmem:[%s283 + $0x9] sm:$0xff]
        %v314 = vpack.c.bf16 %v313, %v312
        %s315 = scalar_lea.vmem %s1, 16
        %v316 = vld [vmem:[%s315] sm:$0x7]
        %v317 = vpack.c.bf16 %v316, %v316
        %v319 = vsel %vm208, %v314, 0
        %v322 = vand.u32 %v317, %v215
        %324 = vmatpush.bf16.msra.mxu0 0
        %325 = vmatpush.bf16.msra.mxu0 0
        %326 = vmatpush.bf16.msra.mxu0 0
        %327 = vmatpush.bf16.msra.mxu0 0
        %328 = vmatpush.bf16.msra.mxu0 0
        %329 = vmatpush.bf16.msra.mxu0 0
        %330 = vmatpush.bf16.msra.mxu0 0
        %331 = vmatpush.bf16.msra.mxu0 %v322
        %332 = vmatmul.bf16.gmra.mxu0 %v319
        %v333 = vpop.f32.mrf.mxu0
        %v334 = vadd.f32 0.0, %v333
        %v335 = vpop.f32.mrf.mxu0
        %v336 = vadd.f32 0.0, %v335
        %337 = vdwg.mxu0
        %v338 = vadd.f32 %v310, %v334
        %v339 = vadd.f32 %v311, %v336
        %v340 = vld [vmem:[%s283 + $0x2] sm:$0xff]
        %v341 = vld [vmem:[%s283 + $0xa] sm:$0xff]
        %v342 = vpack.c.bf16 %v341, %v340
        %s343 = scalar_lea.vmem %s1, 20
        %v344 = vld [vmem:[%s343] sm:$0x7]
        %v345 = vpack.c.bf16 %v344, %v344
        %v347 = vsel %vm208, %v342, 0
        %v350 = vand.u32 %v345, %v215
        %352 = vmatpush.bf16.msra.mxu0 0
        %353 = vmatpush.bf16.msra.mxu0 0
        %354 = vmatpush.bf16.msra.mxu0 0
        %355 = vmatpush.bf16.msra.mxu0 0
        %356 = vmatpush.bf16.msra.mxu0 0
        %357 = vmatpush.bf16.msra.mxu0 0
        %358 = vmatpush.bf16.msra.mxu0 0
        %359 = vmatpush.bf16.msra.mxu0 %v350
        %360 = vmatmul.bf16.gmra.mxu0 %v347
        %v361 = vpop.f32.mrf.mxu0
        %v362 = vadd.f32 0.0, %v361
        %v363 = vpop.f32.mrf.mxu0
        %v364 = vadd.f32 0.0, %v363
        %365 = vdwg.mxu0
        %v366 = vadd.f32 %v338, %v362
        %v367 = vadd.f32 %v339, %v364
        %s368 = sadd.s32 %s26, 2
        %s369 = smul.u32 %s368, 24
        %s370 = scalar_lea.vmem %s193, %s369
        %v371 = vld [vmem:[%s370] sm:$0xff]
        %v372 = vld [vmem:[%s370 + $0x8] sm:$0xff]
        %v373 = vpack.c.bf16 %v372, %v371
        %s374 = scalar_lea.vmem %s1, 24
        %v375 = vld [vmem:[%s374] sm:$0x7]
        %v376 = vpack.c.bf16 %v375, %v375
        %v378 = vsel %vm208, %v373, 0
        %v381 = vand.u32 %v376, %v215
        %383 = vmatpush.bf16.msra.mxu0 0
        %384 = vmatpush.bf16.msra.mxu0 0
        %385 = vmatpush.bf16.msra.mxu0 0
        %386 = vmatpush.bf16.msra.mxu0 0
        %387 = vmatpush.bf16.msra.mxu0 0
        %388 = vmatpush.bf16.msra.mxu0 0
        %389 = vmatpush.bf16.msra.mxu0 0
        %390 = vmatpush.bf16.msra.mxu0 %v381
        %391 = vmatmul.bf16.gmra.mxu0 %v378
        %v392 = vpop.f32.mrf.mxu0
        %v393 = vadd.f32 0.0, %v392
        %v394 = vpop.f32.mrf.mxu0
        %v395 = vadd.f32 0.0, %v394
        %396 = vdwg.mxu0
        %v397 = vadd.f32 %v366, %v393
        %v398 = vadd.f32 %v367, %v395
        %v399 = vld [vmem:[%s370 + $0x1] sm:$0xff]
        %v400 = vld [vmem:[%s370 + $0x9] sm:$0xff]
        %v401 = vpack.c.bf16 %v400, %v399
        %s402 = scalar_lea.vmem %s1, 28
        %v403 = vld [vmem:[%s402] sm:$0x7]
        %v404 = vpack.c.bf16 %v403, %v403
        %v406 = vsel %vm208, %v401, 0
        %v409 = vand.u32 %v404, %v215
        %411 = vmatpush.bf16.msra.mxu0 0
        %412 = vmatpush.bf16.msra.mxu0 0
        %413 = vmatpush.bf16.msra.mxu0 0
        %414 = vmatpush.bf16.msra.mxu0 0
        %415 = vmatpush.bf16.msra.mxu0 0
        %416 = vmatpush.bf16.msra.mxu0 0
        %417 = vmatpush.bf16.msra.mxu0 0
        %418 = vmatpush.bf16.msra.mxu0 %v409
        %419 = vmatmul.bf16.gmra.mxu0 %v406
        %v420 = vpop.f32.mrf.mxu0
        %v421 = vadd.f32 0.0, %v420
        %v422 = vpop.f32.mrf.mxu0
        %v423 = vadd.f32 0.0, %v422
        %424 = vdwg.mxu0
        %v425 = vadd.f32 %v397, %v421
        %v426 = vadd.f32 %v398, %v423
        %v427 = vld [vmem:[%s370 + $0x2] sm:$0xff]
        %v428 = vld [vmem:[%s370 + $0xa] sm:$0xff]
        %v429 = vpack.c.bf16 %v428, %v427
        %s430 = scalar_lea.vmem %s1, 32
        %v431 = vld [vmem:[%s430] sm:$0x7]
        %v432 = vpack.c.bf16 %v431, %v431
        %v434 = vsel %vm208, %v429, 0
        %v437 = vand.u32 %v432, %v215
        %439 = vmatpush.bf16.msra.mxu0 0
        %440 = vmatpush.bf16.msra.mxu0 0
        %441 = vmatpush.bf16.msra.mxu0 0
        %442 = vmatpush.bf16.msra.mxu0 0
        %443 = vmatpush.bf16.msra.mxu0 0
        %444 = vmatpush.bf16.msra.mxu0 0
        %445 = vmatpush.bf16.msra.mxu0 0
        %446 = vmatpush.bf16.msra.mxu0 %v437
        %447 = vmatmul.bf16.gmra.mxu0 %v434
        %v448 = vpop.f32.mrf.mxu0
        %v449 = vadd.f32 0.0, %v448
        %v450 = vpop.f32.mrf.mxu0
        %v451 = vadd.f32 0.0, %v450
        %452 = vdwg.mxu0
        %v453 = vadd.f32 %v425, %v449
        %v454 = vadd.f32 %v426, %v451
        %vm455 = vcmask 130048
        %456 = vst.msk [vmem:[%s181] sm:$0xff] %vm455, %v453
        %457 = vst.msk [vmem:[%s181 + $0x8] sm:$0xff] %vm455, %v454
        %v458 = vsel %vm455, %v453, 0.0
        %v459 = vsel %vm455, %v454, 0.0
        %v460 = vadd.f32 %v458, %v459
        %v461 = vrot.slane %v460, 4
        %v462 = vadd.f32 %v460, %v461
        %v463 = vrot.slane %v462, 2
        %v464 = vadd.f32 %v462, %v463
        %v465 = vrot.slane %v464, 1
        %v466 = vadd.f32 %v464, %v465
        %v467 = vmul.f32 %v453, %v453
        %v468 = vmul.f32 %v454, %v454
        %v469 = vsel %vm455, %v467, 0.0
        %v470 = vsel %vm455, %v468, 0.0
        %v471 = vadd.f32 %v469, %v470
        %v472 = vrot.slane %v471, 4
        %v473 = vadd.f32 %v471, %v472
        %v474 = vrot.slane %v473, 2
        %v475 = vadd.f32 %v473, %v474
        %v476 = vrot.slane %v475, 1
        %v477 = vadd.f32 %v475, %v476
        %v478 = vsel %vm212, %v466, %v477
        %p479 = scmp.eq.s32.totalorder %s26, 0
        // Predicated region
        $region29: #{tpu_custom_call.1} parent=27 // pred_check
          %p480 = pneg %p479
        $region30: #{tpu_custom_call.1} parent=27 // pred_check_branch
          %482 = sbr.rel (%p480) target = $region32
        $region31: #{tpu_custom_call.1} parent=27 // pred_region
          %vm483 = vcmask 123904
          %484 = vst.msk [vmem:[%s188] sm:$0x3] %vm483, 0.0
        $region32: #{tpu_custom_call.1} parent=27 // pred_fallthru
          _
        %v485 = vld [vmem:[%s188] sm:$0x3]
        %v486 = vadd.f32 %v485, %v478
        %vm487 = vcmask 123904
        %488 = vst.msk [vmem:[%s188] sm:$0x3] %vm487, %v486
        %s489 = sand.u32 %s90, 1
        %s490 = scalar_lea.sflag [#allocation3], %s489
        %s491 = sand.u32 %s90, 1
        %s492 = smul.addr %s491, 16
        %s493 = scalar_lea.vmem [#allocation2], %s492
        %s494 = sand.u32 %s116, 1
        %s495 = scalar_lea.sflag [#allocation5], %s494
        %s496 = sand.u32 %s116, 1
        %s497 = smul.addr %s496, 2
        %s498 = scalar_lea.vmem [#allocation4], %s497
        // Predicated region
        $region33: #{tpu_custom_call.1} parent=27 // pred_check
          %p499 = pneg %p100
        $region34: #{tpu_custom_call.1} parent=27 // pred_check_branch
          %501 = sbr.rel (%p499) target = $region36
        $region35: #{tpu_custom_call.1} parent=27 // pred_region
          %503 = vsyncadd %s490, 0
          %s504 = smul.addr %s26, 2
          %s505 = smul.addr %s25, 32
          %s506 = sadd.s32 %s504, %s505
          %s507 = smul.addr %s506, 8
          %s508 = scalar_lea.hbm %s2, %s507
          %s509 = sshll.u32 %s493, 4
          %s510 = int_to_ptr.vmem [resolvable:$true] %s509
          %s511 = sshll.u32 %s508, 4
          %s512 = int_to_ptr.hbm [resolvable:$true] %s511
          %517 = dma.vmem_to_hbm [thread:$0]  %s510, 256, %s512, %s490, 128, 128, 8
        $region36: #{tpu_custom_call.1} parent=27 // pred_fallthru
          _
        // Predicated region
        $region37: #{tpu_custom_call.1} parent=27 // pred_check
          %p518 = pneg %p126
        $region38: #{tpu_custom_call.1} parent=27 // pred_check_branch
          %520 = sbr.rel (%p518) target = $region40
        $region39: #{tpu_custom_call.1} parent=27 // pred_region
          %522 = vsyncadd %s495, 0
          %s523 = smul.addr %s25, 2
          %s524 = scalar_lea.hbm %s3, %s523
          %s526 = sshll.u32 %s498, 4
          %s527 = int_to_ptr.vmem [resolvable:$true] %s526
          %s528 = sshll.u32 %s524, 4
          %s529 = int_to_ptr.hbm [resolvable:$true] %s528
          %531 = dma.vmem_to_hbm [thread:$0]  %s527, 32, %s529, %s495
        $region40: #{tpu_custom_call.1} parent=27 // pred_fallthru
          _
      $region28: #{tpu_custom_call.1} parent=5 // pred_fallthru
        _
      %p532 = scmp.le.s32.totalorder 2, %s16
      // Predicated region
      $region41: #{tpu_custom_call.1} parent=5 // pred_check
        %p533 = pneg %p532
      $region42: #{tpu_custom_call.1} parent=5 // pred_check_branch
        %535 = sbr.rel (%p533) target = $region44
      $region43: #{tpu_custom_call.1} parent=5 // pred_region
        %s536 = ssub.s32 %s16, 2
        // Predicated region
        $region45: #{tpu_custom_call.1} parent=43 // pred_check
          %p537 = pneg %p106
        $region46: #{tpu_custom_call.1} parent=43 // pred_check_branch
          %539 = sbr.rel (%p537) target = $region48
        $region47: #{tpu_custom_call.1} parent=43 // pred_region
          %s540 = sand.u32 %s91, 1
          %s541 = scalar_lea.sflag [#allocation3], %s540
          %s542 = sand.u32 %s91, 1
          %s543 = smul.addr %s542, 16
          %s544 = scalar_lea.vmem [#allocation2], %s543
          %546 = dma.done %s541, 256
        $region48: #{tpu_custom_call.1} parent=43 // pred_fallthru
          _
        // Predicated region
        $region49: #{tpu_custom_call.1} parent=43 // pred_check
          %p547 = pneg %p132
        $region50: #{tpu_custom_call.1} parent=43 // pred_check_branch
          %549 = sbr.rel (%p547) target = $region52
        $region51: #{tpu_custom_call.1} parent=43 // pred_region
          %s550 = sand.u32 %s117, 1
          %s551 = scalar_lea.sflag [#allocation5], %s550
          %s552 = sand.u32 %s117, 1
          %s553 = smul.addr %s552, 2
          %s554 = scalar_lea.vmem [#allocation4], %s553
          %556 = dma.done %s551, 32
        $region52: #{tpu_custom_call.1} parent=43 // pred_fallthru
          _
      $region44: #{tpu_custom_call.1} parent=5 // pred_fallthru
        _
    $region6: #{tpu_custom_call.1} parent=1 // loop_footer
      %s20 = sadd.s32 1, %s16
    $region7: #{tpu_custom_call.1} parent=1 // loop_footer_branch
      %15 = sbr.rel target = $region3
    $region8: #{tpu_custom_call.1} parent=1 // loop_exit
      _
    %557 = vsyncpa [#allocation3], 1
    %s558 = scalar_lea.sflag [#allocation3], 1
    %559 = vsyncpa %s558, 1
    %560 = vsyncpa [#allocation5], 1
    %s561 = scalar_lea.sflag [#allocation5], 1
    %562 = vsyncpa %s561, 1

</llo_original>
